<compile_context>
chip_gen: v7x
topology: tpu7x:2x2x1
jax: 0.10.0
libtpu: 0.0.40
codegen_flags: <defaults>
</compile_context>

<pallas_src>
import jax
import jax.numpy as jnp
from jax.experimental import pallas as pl

# ---- static config (small shapes consistent with the module) ----
N = 2          # batch
C_IN = 16      # in_planes
C_OUT = 16     # out_planes (== in_planes so residual works with downsample=None)
L = 128        # sequence length
KS = 7         # conv7x1 kernel size
PAD = 3        # "same" padding for kernel 7, stride 1
LPAD = 256     # padded length, rounded up to a lane multiple (128)
C_RED = 4      # SE bottleneck channels (out_planes // reduction, reduction=4)
BN_EPS = 1e-5


def basicblock_kernel(xpad_ref, w1_ref, bn_s_ref, bn_b_ref, fc_w_ref, fc_b_ref,
                      se_w1_ref, se_b1_ref, se_w2_ref, se_b2_ref, out_ref):
    # Hoist all (tiny) parameter loads out of the batch loop.
    w1 = w1_ref[...]          # (C_OUT, KS*C_IN) = (16, 112)
    bn_s = bn_s_ref[...]      # (C_OUT, 1)
    bn_b = bn_b_ref[...]      # (C_OUT, 1)
    fc_w = fc_w_ref[...]      # (C_OUT, C_OUT)  (concat already folded away)
    fc_b = fc_b_ref[...]      # (C_OUT, 1)
    se_w1 = se_w1_ref[...]    # (C_RED, C_OUT)
    se_b1 = se_b1_ref[...]    # (C_RED, 1)
    se_w2 = se_w2_ref[...]    # (C_OUT, C_RED)
    se_b2 = se_b2_ref[...]    # (C_OUT, 1)

    for n in range(N):  # static unroll over the (tiny) batch, single invocation
        xp = xpad_ref[n]                                  # (C_IN, LPAD) lane-aligned

        # Stacked-shift ("im2col") operand: row block k is xpad[:, k:k+L].
        rows = [xp[:, k:k + L] for k in range(KS)]        # 7 x (C_IN, L)
        residual = rows[PAD]                              # == original (unpadded) x_n
        im2col = jnp.concatenate(rows, axis=0)            # (KS*C_IN, L) = (112, 128)

        # conv7x1 as a single 112-deep MXU matmul (f32 accumulation).
        conv = jnp.dot(w1, im2col, preferred_element_type=jnp.float32)  # (C_OUT, L)

        # BatchNorm1d (eval: folded per-channel scale/shift) + ReLU.
        out1 = jnp.maximum(conv * bn_s + bn_b, 0.0)
        # out2 = relu(bn(conv1(x))) uses the SAME conv1/bn => out2 == out1.

        # attention = sigmoid(Conv1d_1x1(AdaptiveAvgPool1d(cat(out1, out2)))).
        # Concat folded into fc_w (wrapper); blend is the identity here but kept
        # for semantic fidelity (a couple of VPU ops).
        p1 = jnp.mean(out1, axis=1, keepdims=True)                       # (C_OUT, 1)
        att = jax.nn.sigmoid(
            jnp.dot(fc_w, p1, preferred_element_type=jnp.float32) + fc_b)
        out = att * out1 + (1.0 - att) * out1

        # Dropout(p=0.2) in eval mode is the identity.
        # TODO(synk): training-mode dropout / batch-stat BN are not implemented.

        # SELayer: squeeze (mean over L) -> Linear -> ReLU -> Linear -> Sigmoid -> scale
        y = jnp.mean(out, axis=1, keepdims=True)                         # (C_OUT, 1)
        h = jnp.maximum(
            jnp.dot(se_w1, y, preferred_element_type=jnp.float32) + se_b1, 0.0)
        s = jax.nn.sigmoid(
            jnp.dot(se_w2, h, preferred_element_type=jnp.float32) + se_b2)
        out = out * s

        # residual add (downsample=None, stride=1, in_planes == out_planes)
        out_ref[n] = (out + residual).astype(out_ref.dtype)              # (C_OUT, L)


def basicblock_forward(x, params):
    """x: (N, C_IN, L) float32 -> (N, C_OUT, L) float32.  Eval-mode semantics."""
    (w1, bn_scale, bn_shift, fc_w, fc_b, se_w1, se_b1, se_w2, se_b2) = params
    n, c, l = x.shape
    assert (n, c, l) == (N, C_IN, L)

    # Pad: 3 halo zeros on the left, zero-extend on the right up to LPAD=256 so
    # every load / shifted slice / store inside the kernel is lane-aligned.
    xpad = jnp.pad(x, ((0, 0), (0, 0), (PAD, LPAD - L - PAD)))

    # Flatten the 7 conv taps into one matrix: column k*C_IN + c multiplies
    # im2col row block k (= xpad[:, k:k+L]) channel c.
    w1_flat = jnp.transpose(w1, (0, 2, 1)).reshape(C_OUT, KS * C_IN)

    # Fold the channel-concat out of the attention fc (out2 == out1):
    # W @ cat(p1, p1) == (W[:, :C] + W[:, C:]) @ p1.
    fc_w_eff = fc_w[:, :C_OUT] + fc_w[:, C_OUT:]

    # No grid: whole problem in one invocation, all operands resident in VMEM.
    return pl.pallas_call(
        basicblock_kernel,
        out_shape=jax.ShapeDtypeStruct((N, C_OUT, L), jnp.float32),
    )(xpad, w1_flat, bn_scale, bn_shift, fc_w_eff, fc_b,
      se_w1, se_b1, se_w2, se_b2)


def ref_forward(x, w1, gamma, beta, rmean, rvar, fc_w, fc_b, se_w1, se_b1, se_w2, se_b2):
    """Pure-JAX reference of the eval-mode forward pass (for correctness check)."""
    conv = jax.lax.conv_general_dilated(
        x, w1, window_strides=(1,), padding=[(PAD, PAD)],
        dimension_numbers=('NCH', 'OIH', 'NCH'))
    bn = ((conv - rmean[None, :, None]) / jnp.sqrt(rvar[None, :, None] + BN_EPS)
          * gamma[None, :, None] + beta[None, :, None])
    out1 = jnp.maximum(bn, 0.0)
    out2 = out1                                        # same conv1/bn applied twice
    cat = jnp.concatenate([out1, out2], axis=1)        # (N, 2C, L)
    pooled = jnp.mean(cat, axis=2)                     # (N, 2C)
    att = jax.nn.sigmoid(pooled @ fc_w.T + fc_b)[:, :, None]
    out = att * out1 + (1 - att) * out2
    y = jnp.mean(out, axis=2)
    h = jnp.maximum(y @ se_w1.T + se_b1, 0.0)
    s = jax.nn.sigmoid(h @ se_w2.T + se_b2)[:, :, None]
    return out * s + x


if __name__ == "__main__":
    key = jax.random.PRNGKey(0)
    keys = jax.random.split(key, 12)

    # deterministic synthetic parameters (shapes from the module __init__)
    w1 = jax.random.normal(keys[0], (C_OUT, C_IN, KS), jnp.float32) * 0.1   # conv7x1, bias=False
    gamma = 1.0 + 0.1 * jax.random.normal(keys[1], (C_OUT,), jnp.float32)   # bn weight
    beta = 0.1 * jax.random.normal(keys[2], (C_OUT,), jnp.float32)          # bn bias
    rmean = 0.1 * jax.random.normal(keys[3], (C_OUT,), jnp.float32)         # bn running_mean
    rvar = 0.5 + jax.random.uniform(keys[4], (C_OUT,), jnp.float32)         # bn running_var
    fc_w = jax.random.normal(keys[5], (C_OUT, 2 * C_OUT), jnp.float32) * 0.1  # Conv1d 1x1 weight
    fc_b = 0.1 * jax.random.normal(keys[6], (C_OUT,), jnp.float32)            # Conv1d 1x1 bias
    se_w1 = jax.random.normal(keys[7], (C_RED, C_OUT), jnp.float32) * 0.1
    se_b1 = 0.1 * jax.random.normal(keys[8], (C_RED,), jnp.float32)
    se_w2 = jax.random.normal(keys[9], (C_OUT, C_RED), jnp.float32) * 0.1
    se_b2 = 0.1 * jax.random.normal(keys[10], (C_OUT,), jnp.float32)

    # fold BN (eval) into per-channel scale/shift for the kernel
    inv_std = 1.0 / jnp.sqrt(rvar + BN_EPS)
    bn_scale = (gamma * inv_std).reshape(C_OUT, 1)
    bn_shift = (beta - rmean * gamma * inv_std).reshape(C_OUT, 1)

    params = (w1, bn_scale, bn_shift,
              fc_w, fc_b.reshape(C_OUT, 1),
              se_w1, se_b1.reshape(C_RED, 1),
              se_w2, se_b2.reshape(C_OUT, 1))

    x = jax.random.normal(keys[11], (N, C_IN, L), jnp.float32)

    out = jax.block_until_ready(basicblock_forward(x, params))

    ref = ref_forward(x, w1, gamma, beta, rmean, rvar,
                      fc_w, fc_b, se_w1, se_b1, se_w2, se_b2)
    assert out.shape == (N, C_OUT, L)
    assert jnp.allclose(out, ref, rtol=1e-4, atol=1e-4), "Pallas kernel mismatch vs reference"

    print("KERNEL_OK")
</pallas_src>

<mosaic_0001>
module attributes {stable_mosaic.version = 11 : i64} {
  func.func @basicblock_kernel(%arg0: memref<2x16x256xf32, #tpu.memory_space<vmem>>, %arg1: memref<16x112xf32, #tpu.memory_space<vmem>>, %arg2: memref<16x1xf32, #tpu.memory_space<vmem>>, %arg3: memref<16x1xf32, #tpu.memory_space<vmem>>, %arg4: memref<16x16xf32, #tpu.memory_space<vmem>>, %arg5: memref<16x1xf32, #tpu.memory_space<vmem>>, %arg6: memref<4x16xf32, #tpu.memory_space<vmem>>, %arg7: memref<4x1xf32, #tpu.memory_space<vmem>>, %arg8: memref<16x4xf32, #tpu.memory_space<vmem>>, %arg9: memref<16x1xf32, #tpu.memory_space<vmem>>, %arg10: memref<2x16x128xf32, #tpu.memory_space<vmem>>) attributes {dimension_semantics = [], scalar_prefetch = 0 : i64, scratch_operands = 0 : i64, tpu.core_type = #tpu.core_type<tc>} {
    %c0 = arith.constant 0 : index
    %c0_0 = arith.constant 0 : index
    %0 = vector.load %arg1[%c0, %c0_0] : memref<16x112xf32, #tpu.memory_space<vmem>>, vector<16x112xf32>
    %c0_1 = arith.constant 0 : index
    %c0_2 = arith.constant 0 : index
    %1 = vector.load %arg2[%c0_1, %c0_2] : memref<16x1xf32, #tpu.memory_space<vmem>>, vector<16x1xf32>
    %c0_3 = arith.constant 0 : index
    %c0_4 = arith.constant 0 : index
    %2 = vector.load %arg3[%c0_3, %c0_4] : memref<16x1xf32, #tpu.memory_space<vmem>>, vector<16x1xf32>
    %c0_5 = arith.constant 0 : index
    %c0_6 = arith.constant 0 : index
    %3 = vector.load %arg4[%c0_5, %c0_6] : memref<16x16xf32, #tpu.memory_space<vmem>>, vector<16x16xf32>
    %c0_7 = arith.constant 0 : index
    %c0_8 = arith.constant 0 : index
    %4 = vector.load %arg5[%c0_7, %c0_8] : memref<16x1xf32, #tpu.memory_space<vmem>>, vector<16x1xf32>
    %c0_9 = arith.constant 0 : index
    %c0_10 = arith.constant 0 : index
    %5 = vector.load %arg6[%c0_9, %c0_10] : memref<4x16xf32, #tpu.memory_space<vmem>>, vector<4x16xf32>
    %c0_11 = arith.constant 0 : index
    %c0_12 = arith.constant 0 : index
    %6 = vector.load %arg7[%c0_11, %c0_12] : memref<4x1xf32, #tpu.memory_space<vmem>>, vector<4x1xf32>
    %c0_13 = arith.constant 0 : index
    %c0_14 = arith.constant 0 : index
    %7 = vector.load %arg8[%c0_13, %c0_14] : memref<16x4xf32, #tpu.memory_space<vmem>>, vector<16x4xf32>
    %c0_15 = arith.constant 0 : index
    %c0_16 = arith.constant 0 : index
    %8 = vector.load %arg9[%c0_15, %c0_16] : memref<16x1xf32, #tpu.memory_space<vmem>>, vector<16x1xf32>
    %c0_17 = arith.constant 0 : index
    %c0_18 = arith.constant 0 : index
    %c0_19 = arith.constant 0 : index
    %9 = vector.load %arg0[%c0_17, %c0_18, %c0_19] : memref<2x16x256xf32, #tpu.memory_space<vmem>>, vector<1x16x256xf32>
    %10 = vector.shape_cast %9 : vector<1x16x256xf32> to vector<16x256xf32>
    %11 = vector.extract_strided_slice %10 {offsets = [0, 0], sizes = [16, 128], strides = [1, 1]} : vector<16x256xf32> to vector<16x128xf32>
    %12 = vector.extract_strided_slice %10 {offsets = [0, 1], sizes = [16, 128], strides = [1, 1]} : vector<16x256xf32> to vector<16x128xf32>
    %13 = vector.extract_strided_slice %10 {offsets = [0, 2], sizes = [16, 128], strides = [1, 1]} : vector<16x256xf32> to vector<16x128xf32>
    %14 = vector.extract_strided_slice %10 {offsets = [0, 3], sizes = [16, 128], strides = [1, 1]} : vector<16x256xf32> to vector<16x128xf32>
    %15 = vector.extract_strided_slice %10 {offsets = [0, 4], sizes = [16, 128], strides = [1, 1]} : vector<16x256xf32> to vector<16x128xf32>
    %16 = vector.extract_strided_slice %10 {offsets = [0, 5], sizes = [16, 128], strides = [1, 1]} : vector<16x256xf32> to vector<16x128xf32>
    %17 = vector.extract_strided_slice %10 {offsets = [0, 6], sizes = [16, 128], strides = [1, 1]} : vector<16x256xf32> to vector<16x128xf32>
    %18 = tpu.concatenate %11, %12, %13, %14, %15, %16, %17 in 0 : vector<16x128xf32>, vector<16x128xf32>, vector<16x128xf32>, vector<16x128xf32>, vector<16x128xf32>, vector<16x128xf32>, vector<16x128xf32> -> vector<112x128xf32>
    %cst = arith.constant dense<0.000000e+00> : vector<16x128xf32>
    %19 = tpu.matmul %0, %18, %cst {dimension_numbers = #tpu.dot_dimension_numbers<[1], [0], [0], [1], [0, 0, 1, 1], [], []>} : vector<16x112xf32>, vector<112x128xf32>, vector<16x128xf32> -> vector<16x128xf32>
    %20 = vector.broadcast %1 : vector<16x1xf32> to vector<16x128xf32>
    %21 = arith.mulf %19, %20 : vector<16x128xf32>
    %22 = vector.broadcast %2 : vector<16x1xf32> to vector<16x128xf32>
    %23 = arith.addf %21, %22 : vector<16x128xf32>
    %cst_20 = arith.constant 0.000000e+00 : f32
    %24 = vector.broadcast %cst_20 : f32 to vector<16x128xf32>
    %25 = arith.maximumf %23, %24 : vector<16x128xf32>
    %cst_21 = arith.constant dense<0.000000e+00> : vector<16xf32>
    %26 = vector.multi_reduction <add>, %25, %cst_21 [1] : vector<16x128xf32> to vector<16xf32>
    %27 = vector.shape_cast %26 : vector<16xf32> to vector<16x1xf32>
    %cst_22 = arith.constant 1.280000e+02 : f32
    %28 = vector.broadcast %cst_22 : f32 to vector<16x1xf32>
    %29 = arith.divf %27, %28 : vector<16x1xf32>
    %cst_23 = arith.constant dense<0.000000e+00> : vector<16x1xf32>
    %30 = tpu.matmul %3, %29, %cst_23 {dimension_numbers = #tpu.dot_dimension_numbers<[1], [0], [0], [1], [0, 0, 1, 1], [], []>} : vector<16x16xf32>, vector<16x1xf32>, vector<16x1xf32> -> vector<16x1xf32>
    %31 = arith.addf %30, %4 : vector<16x1xf32>
    %32 = arith.negf %31 : vector<16x1xf32>
    %33 = math.exp %32 : vector<16x1xf32>
    %cst_24 = arith.constant 1.000000e+00 : f32
    %34 = vector.broadcast %cst_24 : f32 to vector<16x1xf32>
    %35 = arith.addf %34, %33 : vector<16x1xf32>
    %36 = arith.divf %34, %35 : vector<16x1xf32>
    %37 = vector.broadcast %36 : vector<16x1xf32> to vector<16x128xf32>
    %38 = arith.mulf %37, %25 : vector<16x128xf32>
    %cst_25 = arith.constant 1.000000e+00 : f32
    %39 = vector.broadcast %cst_25 : f32 to vector<16x1xf32>
    %40 = arith.subf %39, %36 : vector<16x1xf32>
    %41 = vector.broadcast %40 : vector<16x1xf32> to vector<16x128xf32>
    %42 = arith.mulf %41, %25 : vector<16x128xf32>
    %43 = arith.addf %38, %42 : vector<16x128xf32>
    %cst_26 = arith.constant dense<0.000000e+00> : vector<16xf32>
    %44 = vector.multi_reduction <add>, %43, %cst_26 [1] : vector<16x128xf32> to vector<16xf32>
    %45 = vector.shape_cast %44 : vector<16xf32> to vector<16x1xf32>
    %cst_27 = arith.constant 1.280000e+02 : f32
    %46 = vector.broadcast %cst_27 : f32 to vector<16x1xf32>
    %47 = arith.divf %45, %46 : vector<16x1xf32>
    %cst_28 = arith.constant dense<0.000000e+00> : vector<4x1xf32>
    %48 = tpu.matmul %5, %47, %cst_28 {dimension_numbers = #tpu.dot_dimension_numbers<[1], [0], [0], [1], [0, 0, 1, 1], [], []>} : vector<4x16xf32>, vector<16x1xf32>, vector<4x1xf32> -> vector<4x1xf32>
    %49 = arith.addf %48, %6 : vector<4x1xf32>
    %cst_29 = arith.constant 0.000000e+00 : f32
    %50 = vector.broadcast %cst_29 : f32 to vector<4x1xf32>
    %51 = arith.maximumf %49, %50 : vector<4x1xf32>
    %cst_30 = arith.constant dense<0.000000e+00> : vector<16x1xf32>
    %52 = tpu.matmul %7, %51, %cst_30 {dimension_numbers = #tpu.dot_dimension_numbers<[1], [0], [0], [1], [0, 0, 1, 1], [], []>} : vector<16x4xf32>, vector<4x1xf32>, vector<16x1xf32> -> vector<16x1xf32>
    %53 = arith.addf %52, %8 : vector<16x1xf32>
    %54 = arith.negf %53 : vector<16x1xf32>
    %55 = math.exp %54 : vector<16x1xf32>
    %cst_31 = arith.constant 1.000000e+00 : f32
    %56 = vector.broadcast %cst_31 : f32 to vector<16x1xf32>
    %57 = arith.addf %56, %55 : vector<16x1xf32>
    %58 = arith.divf %56, %57 : vector<16x1xf32>
    %59 = vector.broadcast %58 : vector<16x1xf32> to vector<16x128xf32>
    %60 = arith.mulf %43, %59 : vector<16x128xf32>
    %61 = arith.addf %60, %14 : vector<16x128xf32>
    %c0_32 = arith.constant 0 : index
    %c0_33 = arith.constant 0 : index
    %c0_34 = arith.constant 0 : index
    %62 = vector.load %arg10[%c0_32, %c0_33, %c0_34] : memref<2x16x128xf32, #tpu.memory_space<vmem>>, vector<1x16x128xf32>
    %63 = vector.shape_cast %62 : vector<1x16x128xf32> to vector<16x128xf32>
    %64 = vector.shape_cast %61 : vector<16x128xf32> to vector<1x16x128xf32>
    tpu.vector_store %arg10[%c0_32, %c0_33, %c0_34], %64 {strides = array<i32>} : memref<2x16x128xf32, #tpu.memory_space<vmem>>, vector<1x16x128xf32>,
    %c1 = arith.constant 1 : index
    %c0_35 = arith.constant 0 : index
    %c0_36 = arith.constant 0 : index
    %65 = vector.load %arg0[%c1, %c0_35, %c0_36] : memref<2x16x256xf32, #tpu.memory_space<vmem>>, vector<1x16x256xf32>
    %66 = vector.shape_cast %65 : vector<1x16x256xf32> to vector<16x256xf32>
    %67 = vector.extract_strided_slice %66 {offsets = [0, 0], sizes = [16, 128], strides = [1, 1]} : vector<16x256xf32> to vector<16x128xf32>
    %68 = vector.extract_strided_slice %66 {offsets = [0, 1], sizes = [16, 128], strides = [1, 1]} : vector<16x256xf32> to vector<16x128xf32>
    %69 = vector.extract_strided_slice %66 {offsets = [0, 2], sizes = [16, 128], strides = [1, 1]} : vector<16x256xf32> to vector<16x128xf32>
    %70 = vector.extract_strided_slice %66 {offsets = [0, 3], sizes = [16, 128], strides = [1, 1]} : vector<16x256xf32> to vector<16x128xf32>
    %71 = vector.extract_strided_slice %66 {offsets = [0, 4], sizes = [16, 128], strides = [1, 1]} : vector<16x256xf32> to vector<16x128xf32>
    %72 = vector.extract_strided_slice %66 {offsets = [0, 5], sizes = [16, 128], strides = [1, 1]} : vector<16x256xf32> to vector<16x128xf32>
    %73 = vector.extract_strided_slice %66 {offsets = [0, 6], sizes = [16, 128], strides = [1, 1]} : vector<16x256xf32> to vector<16x128xf32>
    %74 = tpu.concatenate %67, %68, %69, %70, %71, %72, %73 in 0 : vector<16x128xf32>, vector<16x128xf32>, vector<16x128xf32>, vector<16x128xf32>, vector<16x128xf32>, vector<16x128xf32>, vector<16x128xf32> -> vector<112x128xf32>
    %cst_37 = arith.constant dense<0.000000e+00> : vector<16x128xf32>
    %75 = tpu.matmul %0, %74, %cst_37 {dimension_numbers = #tpu.dot_dimension_numbers<[1], [0], [0], [1], [0, 0, 1, 1], [], []>} : vector<16x112xf32>, vector<112x128xf32>, vector<16x128xf32> -> vector<16x128xf32>
    %76 = vector.broadcast %1 : vector<16x1xf32> to vector<16x128xf32>
    %77 = arith.mulf %75, %76 : vector<16x128xf32>
    %78 = vector.broadcast %2 : vector<16x1xf32> to vector<16x128xf32>
    %79 = arith.addf %77, %78 : vector<16x128xf32>
    %cst_38 = arith.constant 0.000000e+00 : f32
    %80 = vector.broadcast %cst_38 : f32 to vector<16x128xf32>
    %81 = arith.maximumf %79, %80 : vector<16x128xf32>
    %cst_39 = arith.constant dense<0.000000e+00> : vector<16xf32>
    %82 = vector.multi_reduction <add>, %81, %cst_39 [1] : vector<16x128xf32> to vector<16xf32>
    %83 = vector.shape_cast %82 : vector<16xf32> to vector<16x1xf32>
    %cst_40 = arith.constant 1.280000e+02 : f32
    %84 = vector.broadcast %cst_40 : f32 to vector<16x1xf32>
    %85 = arith.divf %83, %84 : vector<16x1xf32>
    %cst_41 = arith.constant dense<0.000000e+00> : vector<16x1xf32>
    %86 = tpu.matmul %3, %85, %cst_41 {dimension_numbers = #tpu.dot_dimension_numbers<[1], [0], [0], [1], [0, 0, 1, 1], [], []>} : vector<16x16xf32>, vector<16x1xf32>, vector<16x1xf32> -> vector<16x1xf32>
    %87 = arith.addf %86, %4 : vector<16x1xf32>
    %88 = arith.negf %87 : vector<16x1xf32>
    %89 = math.exp %88 : vector<16x1xf32>
    %cst_42 = arith.constant 1.000000e+00 : f32
    %90 = vector.broadcast %cst_42 : f32 to vector<16x1xf32>
    %91 = arith.addf %90, %89 : vector<16x1xf32>
    %92 = arith.divf %90, %91 : vector<16x1xf32>
    %93 = vector.broadcast %92 : vector<16x1xf32> to vector<16x128xf32>
    %94 = arith.mulf %93, %81 : vector<16x128xf32>
    %cst_43 = arith.constant 1.000000e+00 : f32
    %95 = vector.broadcast %cst_43 : f32 to vector<16x1xf32>
    %96 = arith.subf %95, %92 : vector<16x1xf32>
    %97 = vector.broadcast %96 : vector<16x1xf32> to vector<16x128xf32>
    %98 = arith.mulf %97, %81 : vector<16x128xf32>
    %99 = arith.addf %94, %98 : vector<16x128xf32>
    %cst_44 = arith.constant dense<0.000000e+00> : vector<16xf32>
    %100 = vector.multi_reduction <add>, %99, %cst_44 [1] : vector<16x128xf32> to vector<16xf32>
    %101 = vector.shape_cast %100 : vector<16xf32> to vector<16x1xf32>
    %cst_45 = arith.constant 1.280000e+02 : f32
    %102 = vector.broadcast %cst_45 : f32 to vector<16x1xf32>
    %103 = arith.divf %101, %102 : vector<16x1xf32>
    %cst_46 = arith.constant dense<0.000000e+00> : vector<4x1xf32>
    %104 = tpu.matmul %5, %103, %cst_46 {dimension_numbers = #tpu.dot_dimension_numbers<[1], [0], [0], [1], [0, 0, 1, 1], [], []>} : vector<4x16xf32>, vector<16x1xf32>, vector<4x1xf32> -> vector<4x1xf32>
    %105 = arith.addf %104, %6 : vector<4x1xf32>
    %cst_47 = arith.constant 0.000000e+00 : f32
    %106 = vector.broadcast %cst_47 : f32 to vector<4x1xf32>
    %107 = arith.maximumf %105, %106 : vector<4x1xf32>
    %cst_48 = arith.constant dense<0.000000e+00> : vector<16x1xf32>
    %108 = tpu.matmul %7, %107, %cst_48 {dimension_numbers = #tpu.dot_dimension_numbers<[1], [0], [0], [1], [0, 0, 1, 1], [], []>} : vector<16x4xf32>, vector<4x1xf32>, vector<16x1xf32> -> vector<16x1xf32>
    %109 = arith.addf %108, %8 : vector<16x1xf32>
    %110 = arith.negf %109 : vector<16x1xf32>
    %111 = math.exp %110 : vector<16x1xf32>
    %cst_49 = arith.constant 1.000000e+00 : f32
    %112 = vector.broadcast %cst_49 : f32 to vector<16x1xf32>
    %113 = arith.addf %112, %111 : vector<16x1xf32>
    %114 = arith.divf %112, %113 : vector<16x1xf32>
    %115 = vector.broadcast %114 : vector<16x1xf32> to vector<16x128xf32>
    %116 = arith.mulf %99, %115 : vector<16x128xf32>
    %117 = arith.addf %116, %70 : vector<16x128xf32>
    %c1_50 = arith.constant 1 : index
    %c0_51 = arith.constant 0 : index
    %c0_52 = arith.constant 0 : index
    %118 = vector.load %arg10[%c1_50, %c0_51, %c0_52] : memref<2x16x128xf32, #tpu.memory_space<vmem>>, vector<1x16x128xf32>
    %119 = vector.shape_cast %118 : vector<1x16x128xf32> to vector<16x128xf32>
    %120 = vector.shape_cast %117 : vector<16x128xf32> to vector<1x16x128xf32>
    tpu.vector_store %arg10[%c1_50, %c0_51, %c0_52], %120 {strides = array<i32>} : memref<2x16x128xf32, #tpu.memory_space<vmem>>, vector<1x16x128xf32>,
    return
  }
}

</mosaic_0001>

<llo_original>
// kernel: tpu_custom_call.1
$region0: #{tpu_custom_call.1}
  #allocation0 [shape = 'u32[]', space=smem, size = 0x4, offset = 0x4, fixed_abs, tag = 'smem constant byte address 0x4 - core index']
  #allocation1 [shape = 'u32[144,128]{1,0:T(1,128)}', space=vmem, size = 0x12000, scoped, tag = 'internal scratch']
  %s0 = inlined_call_operand.vmem [shape: f32[2,16,256], index: 0, kind: input, shape index: {}]
  %s1 = inlined_call_operand.vmem [shape: f32[16,112], index: 1, kind: input, shape index: {}]
  %s2 = inlined_call_operand.vmem [shape: f32[16,1], index: 2, kind: input, shape index: {}]
  %s3 = inlined_call_operand.vmem [shape: f32[16,1], index: 3, kind: input, shape index: {}]
  %s4 = inlined_call_operand.vmem [shape: f32[16,16], index: 4, kind: input, shape index: {}]
  %s5 = inlined_call_operand.vmem [shape: f32[16,1], index: 5, kind: input, shape index: {}]
  %s6 = inlined_call_operand.vmem [shape: f32[4,16], index: 6, kind: input, shape index: {}]
  %s7 = inlined_call_operand.vmem [shape: f32[4,1], index: 7, kind: input, shape index: {}]
  %s8 = inlined_call_operand.vmem [shape: f32[16,4], index: 8, kind: input, shape index: {}]
  %s9 = inlined_call_operand.vmem [shape: f32[16,1], index: 9, kind: input, shape index: {}]
  %s10 = inlined_call_operand.hbm [shape: f32[2,16,128], index: 10, kind: output, shape index: {}]
  %s11 = sld [smem:[#allocation0]]
  $region50: #{tpu_custom_call.1} parent=0
    _
  %s13 = ssub.s32 1, %s11
  %s14 = scalar_select 0, %s13, %s11
  $region1: #{tpu_custom_call.1} parent=0
    #allocation2 [shape = 'u8[16384]{0}', space=vmem, size = 0x4000, scoped, tag = 'output window, operand 0, single buffered']
    #allocation3 [shape = 's32[1]{0}', space=sflag, size = 0x4, scoped, tag = 'scoped memory for tpu_custom_call.1']
    %15 = vsyncpa [#allocation3], 0
    // Predicated region
    $region2: #{tpu_custom_call.1} parent=1 // pred_check
      _
    $region3: #{tpu_custom_call.1} parent=1 // pred_check_branch
      %17 = sbr.rel (0) target = $region5
    $region4: #{tpu_custom_call.1} parent=1 // pred_region
      _
    $region5: #{tpu_custom_call.1} parent=1 // pred_fallthru
      _
    // Predicated region
    $region6: #{tpu_custom_call.1} parent=1 // pred_check
      _
    $region7: #{tpu_custom_call.1} parent=1 // pred_check_branch
      %19 = sbr.rel (0) target = $region9
    $region8: #{tpu_custom_call.1} parent=1 // pred_region
      _
    $region9: #{tpu_custom_call.1} parent=1 // pred_fallthru
      _
    // Predicated region
    $region10: #{tpu_custom_call.1} parent=1 // pred_check
      _
    $region11: #{tpu_custom_call.1} parent=1 // pred_check_branch
      %21 = sbr.rel (0) target = $region13
    $region12: #{tpu_custom_call.1} parent=1 // pred_region
      _
    $region13: #{tpu_custom_call.1} parent=1 // pred_fallthru
      _
    // Predicated region
    $region14: #{tpu_custom_call.1} parent=1 // pred_check
      _
    $region15: #{tpu_custom_call.1} parent=1 // pred_check_branch
      %23 = sbr.rel (0) target = $region17
    $region16: #{tpu_custom_call.1} parent=1 // pred_region
      _
    $region17: #{tpu_custom_call.1} parent=1 // pred_fallthru
      _
    // Predicated region
    $region18: #{tpu_custom_call.1} parent=1 // pred_check
      _
    $region19: #{tpu_custom_call.1} parent=1 // pred_check_branch
      %25 = sbr.rel (0) target = $region21
    $region20: #{tpu_custom_call.1} parent=1 // pred_region
      _
    $region21: #{tpu_custom_call.1} parent=1 // pred_fallthru
      _
    // Predicated region
    $region22: #{tpu_custom_call.1} parent=1 // pred_check
      _
    $region23: #{tpu_custom_call.1} parent=1 // pred_check_branch
      %27 = sbr.rel (0) target = $region25
    $region24: #{tpu_custom_call.1} parent=1 // pred_region
      _
    $region25: #{tpu_custom_call.1} parent=1 // pred_fallthru
      _
    // Predicated region
    $region26: #{tpu_custom_call.1} parent=1 // pred_check
      _
    $region27: #{tpu_custom_call.1} parent=1 // pred_check_branch
      %29 = sbr.rel (0) target = $region29
    $region28: #{tpu_custom_call.1} parent=1 // pred_region
      _
    $region29: #{tpu_custom_call.1} parent=1 // pred_fallthru
      _
    // Predicated region
    $region30: #{tpu_custom_call.1} parent=1 // pred_check
      _
    $region31: #{tpu_custom_call.1} parent=1 // pred_check_branch
      %31 = sbr.rel (0) target = $region33
    $region32: #{tpu_custom_call.1} parent=1 // pred_region
      _
    $region33: #{tpu_custom_call.1} parent=1 // pred_fallthru
      _
    // Predicated region
    $region34: #{tpu_custom_call.1} parent=1 // pred_check
      _
    $region35: #{tpu_custom_call.1} parent=1 // pred_check_branch
      %33 = sbr.rel (0) target = $region37
    $region36: #{tpu_custom_call.1} parent=1 // pred_region
      _
    $region37: #{tpu_custom_call.1} parent=1 // pred_fallthru
      _
    // Predicated region
    $region38: #{tpu_custom_call.1} parent=1 // pred_check
      _
    $region39: #{tpu_custom_call.1} parent=1 // pred_check_branch
      %35 = sbr.rel (0) target = $region41
    $region40: #{tpu_custom_call.1} parent=1 // pred_region
      _
    $region41: #{tpu_custom_call.1} parent=1 // pred_fallthru
      _
    %v36 = vld [vmem:[%s1] sm:$0xff]
    %v37 = vld [vmem:[%s1 + $0x8] sm:$0xff]
    %v38 = vld [vmem:[%s2] sm:$0xff]
    %v39 = vld [vmem:[%s2 + $0x8] sm:$0xff]
    %v40 = vld [vmem:[%s3] sm:$0xff]
    %v41 = vld [vmem:[%s3 + $0x8] sm:$0xff]
    %v42 = vld [vmem:[%s4] sm:$0xff]
    %v43 = vld [vmem:[%s4 + $0x8] sm:$0xff]
    %v44 = vld [vmem:[%s5] sm:$0xff]
    %v45 = vld [vmem:[%s5 + $0x8] sm:$0xff]
    %v46 = vld [vmem:[%s6] sm:$0xf]
    %v47 = vld [vmem:[%s7] sm:$0xf]
    %v48 = vld [vmem:[%s8] sm:$0xff]
    %v49 = vld [vmem:[%s8 + $0x8] sm:$0xff]
    %v50 = vld [vmem:[%s9] sm:$0xff]
    %v51 = vld [vmem:[%s9 + $0x8] sm:$0xff]
    %v52 = vld [vmem:[%s0] sm:$0xff]
    %v53 = vld [vmem:[%s0 + $0x8] sm:$0xff]
    %v54 = vld [vmem:[%s0 + $0x10] sm:$0xff]
    %v55 = vld [vmem:[%s0 + $0x18] sm:$0xff]
    %60 = vrot.lane.b32.xlu0 %v52, 127
    %v61 = vpop.permute.xlu0 %60
    %62 = vrot.lane.b32.xlu0 %v53, 127
    %v63 = vpop.permute.xlu0 %62
    %64 = vrot.lane.b32.xlu0 %v54, 127
    %v65 = vpop.permute.xlu0 %64
    %66 = vrot.lane.b32.xlu0 %v55, 127
    %v67 = vpop.permute.xlu0 %66
    %vm68 = vcmask 1039360
    %v69 = vsel %vm68, %v61, %v63
    %v70 = vsel %vm68, %v65, %v67
    %73 = vrot.lane.b32.xlu0 %v52, 126
    %v74 = vpop.permute.xlu0 %73
    %75 = vrot.lane.b32.xlu0 %v53, 126
    %v76 = vpop.permute.xlu0 %75
    %77 = vrot.lane.b32.xlu0 %v54, 126
    %v78 = vpop.permute.xlu0 %77
    %79 = vrot.lane.b32.xlu0 %v55, 126
    %v80 = vpop.permute.xlu0 %79
    %vm81 = vcmask 1031168
    %v82 = vsel %vm81, %v74, %v76
    %v83 = vsel %vm81, %v78, %v80
    %86 = vrot.lane.b32.xlu0 %v52, 125
    %v87 = vpop.permute.xlu0 %86
    %88 = vrot.lane.b32.xlu0 %v53, 125
    %v89 = vpop.permute.xlu0 %88
    %90 = vrot.lane.b32.xlu0 %v54, 125
    %v91 = vpop.permute.xlu0 %90
    %92 = vrot.lane.b32.xlu0 %v55, 125
    %v93 = vpop.permute.xlu0 %92
    %vm94 = vcmask 1022976
    %v95 = vsel %vm94, %v87, %v89
    %v96 = vsel %vm94, %v91, %v93
    %99 = vrot.lane.b32.xlu0 %v52, 124
    %v100 = vpop.permute.xlu0 %99
    %101 = vrot.lane.b32.xlu0 %v53, 124
    %v102 = vpop.permute.xlu0 %101
    %103 = vrot.lane.b32.xlu0 %v54, 124
    %v104 = vpop.permute.xlu0 %103
    %105 = vrot.lane.b32.xlu0 %v55, 124
    %v106 = vpop.permute.xlu0 %105
    %vm107 = vcmask 1014784
    %v108 = vsel %vm107, %v100, %v102
    %v109 = vsel %vm107, %v104, %v106
    %112 = vrot.lane.b32.xlu0 %v52, 123
    %v113 = vpop.permute.xlu0 %112
    %114 = vrot.lane.b32.xlu0 %v53, 123
    %v115 = vpop.permute.xlu0 %114
    %116 = vrot.lane.b32.xlu0 %v54, 123
    %v117 = vpop.permute.xlu0 %116
    %118 = vrot.lane.b32.xlu0 %v55, 123
    %v119 = vpop.permute.xlu0 %118
    %vm120 = vcmask 1006592
    %v121 = vsel %vm120, %v113, %v115
    %v122 = vsel %vm120, %v117, %v119
    %125 = vrot.lane.b32.xlu0 %v52, 122
    %v126 = vpop.permute.xlu0 %125
    %127 = vrot.lane.b32.xlu0 %v53, 122
    %v128 = vpop.permute.xlu0 %127
    %129 = vrot.lane.b32.xlu0 %v54, 122
    %v130 = vpop.permute.xlu0 %129
    %131 = vrot.lane.b32.xlu0 %v55, 122
    %v132 = vpop.permute.xlu0 %131
    %vm133 = vcmask 998400
    %v134 = vsel %vm133, %v126, %v128
    %v135 = vsel %vm133, %v130, %v132
    %vm138 = vcmask 916480
    %v140 = vsel %vm138, %v36, 0
    %v143 = vsel %vm138, %v37, 0
    %145 = vmatprep.subr.mxu0 0.0
    %146 = vmatpush1.msra.mxu0 %v52
    %147 = vmatprep.subr.mxu0 0.0
    %148 = vmatpush1.msra.mxu0 %v54
    %149 = vmatprep.subr.mxu0 0.0
    %150 = vmatpush1.msra.mxu0 %v69
    %151 = vmatprep.subr.mxu0 0.0
    %152 = vmatpush1.msra.mxu0 %v70
    %153 = vmatprep.subr.mxu0 0.0
    %154 = vmatpush1.msra.mxu0 %v82
    %155 = vmatprep.subr.mxu0 0.0
    %156 = vmatpush1.msra.mxu0 %v83
    %157 = vmatprep.subr.mxu0 0.0
    %158 = vmatpush1.msra.mxu0 %v95
    %159 = vmatprep.subr.mxu0 0.0
    %160 = vmatpush1.msra.mxu0 %v96
    %161 = vmatprep.subr.mxu0 0.0
    %162 = vmatpush1.msra.mxu0 %v108
    %163 = vmatprep.subr.mxu0 0.0
    %164 = vmatpush1.msra.mxu0 %v109
    %165 = vmatprep.subr.mxu0 0.0
    %166 = vmatpush1.msra.mxu0 %v121
    %167 = vmatprep.subr.mxu0 0.0
    %168 = vmatpush1.msra.mxu0 %v122
    %169 = vmatprep.subr.mxu0 0.0
    %170 = vmatpush1.msra.mxu0 %v134
    %171 = vmatprep.subr.mxu0 0.0
    %172 = vmatpush1.msra.mxu0 %v135
    %173 = vmatprep.subr.mxu0 0.0
    %174 = vmatpush1.msra.mxu0 0.0
    %175 = vmatprep.subr.mxu0 0.0
    %176 = vmatpush1.msra.mxu0 0.0
    %177 = vmatprep.subr.mxu0 0.0
    %178 = vmatpush1.msra.mxu0 0.0
    %179 = vmatprep.subr.mxu0 0.0
    %180 = vmatpush1.msra.mxu0 0.0
    %181 = vmatprep.subr.mxu0 0.0
    %182 = vmatpush1.msra.mxu0 0.0
    %183 = vmatprep.subr.mxu0 0.0
    %184 = vmatpush1.msra.mxu0 0.0
    %185 = vmatprep.subr.mxu0 0.0
    %186 = vmatpush1.msra.mxu0 0.0
    %187 = vmatprep.subr.mxu0 0.0
    %188 = vmatpush1.msra.mxu0 0.0
    %189 = vmatprep.subr.mxu0 0.0
    %190 = vmatpush1.msra.mxu0 0.0
    %191 = vmatprep.subr.mxu0 0.0
    %192 = vmatpush1.msra.mxu0 0.0
    %193 = vmatprep.subr.mxu0 0.0
    %194 = vmatpush1.msra.mxu0 0.0
    %195 = vmatprep.subr.mxu0 0.0
    %196 = vmatpush1.msra.mxu0 0.0
    %197 = vmatprep.subr.mxu0 0.0
    %198 = vmatpush1.msra.mxu0 0.0
    %199 = vmatprep.subr.mxu0 0.0
    %200 = vmatpush1.msra.mxu0 0.0
    %201 = vmatprep.subr.mxu0 0.0
    %202 = vmatpush1.msra.mxu0 0.0
    %203 = vmatprep.subr.mxu0 0.0
    %204 = vmatpush1.msra.mxu0 0.0
    %205 = vmatprep.subr.mxu0 0.0
    %206 = vmatpush1.msra.mxu0 0.0
    %207 = vmatprep.subr.mxu0 0.0
    %208 = vmatpush1.msra.mxu0 0.0
    %209 = vmatprep.mubr.f32.mxu0 0.0
    %210 = vmatmul.mubr.f32.gmra.mrb[0].mxu0 %v140
    %v211 = vpop.f32.mrb[0].mxu0
    %v212 = vadd.f32 0.0, %v211
    %v213 = vpop.f32.mrb[0].mxu0
    %214 = vmatprep.mubr.f32.mxu0 0.0
    %215 = vmatmul.mubr.f32.gmra.mrb[0].mxu0 %v143
    %v216 = vpop.f32.mrb[0].mxu0
    %v217 = vadd.f32 0.0, %v216
    %v218 = vpop.f32.mrb[0].mxu0
    %219 = vdwg.mxu0
    %221 = vset.pattern.permute.xlu0 0
    %222 = vperm.xlu0 %221, %v38
    %v223 = vpop.permute.xlu0 %222
    %226 = vset.pattern.permute.xlu0 0
    %227 = vperm.xlu0 %226, %v39
    %v228 = vpop.permute.xlu0 %227
    %v230 = vmul.f32 %v212, %v223
    %v231 = vmul.f32 %v217, %v228
    %233 = vset.pattern.permute.xlu0 0
    %234 = vperm.xlu0 %233, %v40
    %v235 = vpop.permute.xlu0 %234
    %238 = vset.pattern.permute.xlu0 0
    %239 = vperm.xlu0 %238, %v41
    %v240 = vpop.permute.xlu0 %239
    %v242 = vadd.f32 %v230, %v235
    %v243 = vadd.f32 %v231, %v240
    %v244 = vmax.f32 %v242, 0.0
    %v245 = vmax.f32 %v243, 0.0
    %246 = vadd.xlane.f32.xlu0 %v244
    %v247 = vpop.xlane.xlu0 %246
    %248 = vadd.xlane.f32.xlu0 %v245
    %v249 = vpop.xlane.xlu0 %248
    %v250 = vrcp.pop 128.0
    %v251 = vmul.f32 %v247, %v250
    %v252 = vmul.f32 %v249, %v250
    %vm253 = vcmask 130048
    %v255 = vsel %vm253, %v42, 0
    %v258 = vsel %vm253, %v43, 0
    %260 = vmatprep.subr.mxu0 0.0
    %261 = vmatpush1.msra.mxu0 %v251
    %262 = vmatprep.subr.mxu0 0.0
    %263 = vmatpush1.msra.mxu0 %v252
    %264 = vmatprep.subr.mxu0 0.0
    %265 = vmatpush1.msra.mxu0 0.0
    %266 = vmatprep.subr.mxu0 0.0
    %267 = vmatpush1.msra.mxu0 0.0
    %268 = vmatprep.subr.mxu0 0.0
    %269 = vmatpush1.msra.mxu0 0.0
    %270 = vmatprep.subr.mxu0 0.0
    %271 = vmatpush1.msra.mxu0 0.0
    %272 = vmatprep.subr.mxu0 0.0
    %273 = vmatpush1.msra.mxu0 0.0
    %274 = vmatprep.subr.mxu0 0.0
    %275 = vmatpush1.msra.mxu0 0.0
    %276 = vmatprep.subr.mxu0 0.0
    %277 = vmatpush1.msra.mxu0 0.0
    %278 = vmatprep.subr.mxu0 0.0
    %279 = vmatpush1.msra.mxu0 0.0
    %280 = vmatprep.subr.mxu0 0.0
    %281 = vmatpush1.msra.mxu0 0.0
    %282 = vmatprep.subr.mxu0 0.0
    %283 = vmatpush1.msra.mxu0 0.0
    %284 = vmatprep.subr.mxu0 0.0
    %285 = vmatpush1.msra.mxu0 0.0
    %286 = vmatprep.subr.mxu0 0.0
    %287 = vmatpush1.msra.mxu0 0.0
    %288 = vmatprep.subr.mxu0 0.0
    %289 = vmatpush1.msra.mxu0 0.0
    %290 = vmatprep.subr.mxu0 0.0
    %291 = vmatpush1.msra.mxu0 0.0
    %292 = vmatprep.subr.mxu0 0.0
    %293 = vmatpush1.msra.mxu0 0.0
    %294 = vmatprep.subr.mxu0 0.0
    %295 = vmatpush1.msra.mxu0 0.0
    %296 = vmatprep.subr.mxu0 0.0
    %297 = vmatpush1.msra.mxu0 0.0
    %298 = vmatprep.subr.mxu0 0.0
    %299 = vmatpush1.msra.mxu0 0.0
    %300 = vmatprep.subr.mxu0 0.0
    %301 = vmatpush1.msra.mxu0 0.0
    %302 = vmatprep.subr.mxu0 0.0
    %303 = vmatpush1.msra.mxu0 0.0
    %304 = vmatprep.subr.mxu0 0.0
    %305 = vmatpush1.msra.mxu0 0.0
    %306 = vmatprep.subr.mxu0 0.0
    %307 = vmatpush1.msra.mxu0 0.0
    %308 = vmatprep.subr.mxu0 0.0
    %309 = vmatpush1.msra.mxu0 0.0
    %310 = vmatprep.subr.mxu0 0.0
    %311 = vmatpush1.msra.mxu0 0.0
    %312 = vmatprep.subr.mxu0 0.0
    %313 = vmatpush1.msra.mxu0 0.0
    %314 = vmatprep.subr.mxu0 0.0
    %315 = vmatpush1.msra.mxu0 0.0
    %316 = vmatprep.subr.mxu0 0.0
    %317 = vmatpush1.msra.mxu0 0.0
    %318 = vmatprep.subr.mxu0 0.0
    %319 = vmatpush1.msra.mxu0 0.0
    %320 = vmatprep.subr.mxu0 0.0
    %321 = vmatpush1.msra.mxu0 0.0
    %322 = vmatprep.subr.mxu0 0.0
    %323 = vmatpush1.msra.mxu0 0.0
    %324 = vmatprep.mubr.f32.mxu0 0.0
    %325 = vmatmul.mubr.f32.gmra.mrb[0].mxu0 %v255
    %v326 = vpop.f32.mrb[0].mxu0
    %v327 = vadd.f32 %v44, %v326
    %v328 = vpop.f32.mrb[0].mxu0
    %329 = vmatprep.mubr.f32.mxu0 0.0
    %330 = vmatmul.mubr.f32.gmra.mrb[0].mxu0 %v258
    %v331 = vpop.f32.mrb[0].mxu0
    %v332 = vadd.f32 %v45, %v331
    %v333 = vpop.f32.mrb[0].mxu0
    %334 = vdwg.mxu0
    %v335 = vxor.u32 %v327, 2147483648
    %v336 = vxor.u32 %v332, 2147483648
    %v337 = vmul.f32 %v335, 1.442695
    %v338 = vpow.pop %v337
    %v339 = vmul.f32 %v336, 1.442695
    %v340 = vpow.pop %v339
    %v341 = vadd.f32 %v338, 1.0
    %v342 = vadd.f32 %v340, 1.0
    %v343 = vrcp.pop %v341
    %v344 = vmul.f32 1.0, %v343
    %v345 = vrcp.pop %v342
    %v346 = vmul.f32 1.0, %v345
    %348 = vset.pattern.permute.xlu0 0
    %349 = vperm.xlu0 %348, %v344
    %v350 = vpop.permute.xlu0 %349
    %353 = vset.pattern.permute.xlu0 0
    %354 = vperm.xlu0 %353, %v346
    %v355 = vpop.permute.xlu0 %354
    %v357 = vmul.f32 %v350, %v244
    %v358 = vmul.f32 %v355, %v245
    %v359 = vsub.f32 1.0, %v344
    %v360 = vsub.f32 1.0, %v346
    %362 = vset.pattern.permute.xlu0 0
    %363 = vperm.xlu0 %362, %v359
    %v364 = vpop.permute.xlu0 %363
    %367 = vset.pattern.permute.xlu0 0
    %368 = vperm.xlu0 %367, %v360
    %v369 = vpop.permute.xlu0 %368
    %v371 = vmul.f32 %v364, %v244
    %v372 = vmul.f32 %v369, %v245
    %v373 = vadd.f32 %v357, %v371
    %v374 = vadd.f32 %v358, %v372
    %375 = vadd.xlane.f32.xlu0 %v373
    %v376 = vpop.xlane.xlu0 %375
    %377 = vadd.xlane.f32.xlu0 %v374
    %v378 = vpop.xlane.xlu0 %377
    %v379 = vmul.f32 %v376, %v250
    %v380 = vmul.f32 %v378, %v250
    %v382 = vsel %vm253, %v46, 0
    %384 = vmatprep.subr.mxu0 0.0
    %385 = vmatpush1.msra.mxu0 %v379
    %386 = vmatprep.subr.mxu0 0.0
    %387 = vmatpush1.msra.mxu0 %v380
    %388 = vmatprep.subr.mxu0 0.0
    %389 = vmatpush1.msra.mxu0 0.0
    %390 = vmatprep.subr.mxu0 0.0
    %391 = vmatpush1.msra.mxu0 0.0
    %392 = vmatprep.subr.mxu0 0.0
    %393 = vmatpush1.msra.mxu0 0.0
    %394 = vmatprep.subr.mxu0 0.0
    %395 = vmatpush1.msra.mxu0 0.0
    %396 = vmatprep.subr.mxu0 0.0
    %397 = vmatpush1.msra.mxu0 0.0
    %398 = vmatprep.subr.mxu0 0.0
    %399 = vmatpush1.msra.mxu0 0.0
    %400 = vmatprep.subr.mxu0 0.0
    %401 = vmatpush1.msra.mxu0 0.0
    %402 = vmatprep.subr.mxu0 0.0
    %403 = vmatpush1.msra.mxu0 0.0
    %404 = vmatprep.subr.mxu0 0.0
    %405 = vmatpush1.msra.mxu0 0.0
    %406 = vmatprep.subr.mxu0 0.0
    %407 = vmatpush1.msra.mxu0 0.0
    %408 = vmatprep.subr.mxu0 0.0
    %409 = vmatpush1.msra.mxu0 0.0
    %410 = vmatprep.subr.mxu0 0.0
    %411 = vmatpush1.msra.mxu0 0.0
    %412 = vmatprep.subr.mxu0 0.0
    %413 = vmatpush1.msra.mxu0 0.0
    %414 = vmatprep.subr.mxu0 0.0
    %415 = vmatpush1.msra.mxu0 0.0
    %416 = vmatprep.subr.mxu0 0.0
    %417 = vmatpush1.msra.mxu0 0.0
    %418 = vmatprep.subr.mxu0 0.0
    %419 = vmatpush1.msra.mxu0 0.0
    %420 = vmatprep.subr.mxu0 0.0
    %421 = vmatpush1.msra.mxu0 0.0
    %422 = vmatprep.subr.mxu0 0.0
    %423 = vmatpush1.msra.mxu0 0.0
    %424 = vmatprep.subr.mxu0 0.0
    %425 = vmatpush1.msra.mxu0 0.0
    %426 = vmatprep.subr.mxu0 0.0
    %427 = vmatpush1.msra.mxu0 0.0
    %428 = vmatprep.subr.mxu0 0.0
    %429 = vmatpush1.msra.mxu0 0.0
    %430 = vmatprep.subr.mxu0 0.0
    %431 = vmatpush1.msra.mxu0 0.0
    %432 = vmatprep.subr.mxu0 0.0
    %433 = vmatpush1.msra.mxu0 0.0
    %434 = vmatprep.subr.mxu0 0.0
    %435 = vmatpush1.msra.mxu0 0.0
    %436 = vmatprep.subr.mxu0 0.0
    %437 = vmatpush1.msra.mxu0 0.0
    %438 = vmatprep.subr.mxu0 0.0
    %439 = vmatpush1.msra.mxu0 0.0
    %440 = vmatprep.subr.mxu0 0.0
    %441 = vmatpush1.msra.mxu0 0.0
    %442 = vmatprep.subr.mxu0 0.0
    %443 = vmatpush1.msra.mxu0 0.0
    %444 = vmatprep.subr.mxu0 0.0
    %445 = vmatpush1.msra.mxu0 0.0
    %446 = vmatprep.subr.mxu0 0.0
    %447 = vmatpush1.msra.mxu0 0.0
    %448 = vmatprep.mubr.f32.mxu0 0.0
    %449 = vmatmul.mubr.f32.gmra.mrb[0].mxu0 %v382
    %v450 = vpop.f32.mrb[0].mxu0
    %v451 = vadd.f32 %v47, %v450
    %v452 = vpop.f32.mrb[0].mxu0
    %453 = vdwg.mxu0
    %v454 = vmax.f32 %v451, 0.0
    %vm455 = vcmask 31744
    %v457 = vsel %vm455, %v48, 0
    %v460 = vsel %vm455, %v49, 0
    %vm462 = vcmask 1043456
    %v464 = vsel %vm462, %v454, 0
    %466 = vmatprep.subr.mxu0 0.0
    %467 = vmatpush1.msra.mxu0 %v464
    %468 = vmatprep.subr.mxu0 0.0
    %469 = vmatpush1.msra.mxu0 0.0
    %470 = vmatprep.subr.mxu0 0.0
    %471 = vmatpush1.msra.mxu0 0.0
    %472 = vmatprep.subr.mxu0 0.0
    %473 = vmatpush1.msra.mxu0 0.0
    %474 = vmatprep.subr.mxu0 0.0
    %475 = vmatpush1.msra.mxu0 0.0
    %476 = vmatprep.subr.mxu0 0.0
    %477 = vmatpush1.msra.mxu0 0.0
    %478 = vmatprep.subr.mxu0 0.0
    %479 = vmatpush1.msra.mxu0 0.0
    %480 = vmatprep.subr.mxu0 0.0
    %481 = vmatpush1.msra.mxu0 0.0
    %482 = vmatprep.subr.mxu0 0.0
    %483 = vmatpush1.msra.mxu0 0.0
    %484 = vmatprep.subr.mxu0 0.0
    %485 = vmatpush1.msra.mxu0 0.0
    %486 = vmatprep.subr.mxu0 0.0
    %487 = vmatpush1.msra.mxu0 0.0
    %488 = vmatprep.subr.mxu0 0.0
    %489 = vmatpush1.msra.mxu0 0.0
    %490 = vmatprep.subr.mxu0 0.0
    %491 = vmatpush1.msra.mxu0 0.0
    %492 = vmatprep.subr.mxu0 0.0
    %493 = vmatpush1.msra.mxu0 0.0
    %494 = vmatprep.subr.mxu0 0.0
    %495 = vmatpush1.msra.mxu0 0.0
    %496 = vmatprep.subr.mxu0 0.0
    %497 = vmatpush1.msra.mxu0 0.0
    %498 = vmatprep.subr.mxu0 0.0
    %499 = vmatpush1.msra.mxu0 0.0
    %500 = vmatprep.subr.mxu0 0.0
    %501 = vmatpush1.msra.mxu0 0.0
    %502 = vmatprep.subr.mxu0 0.0
    %503 = vmatpush1.msra.mxu0 0.0
    %504 = vmatprep.subr.mxu0 0.0
    %505 = vmatpush1.msra.mxu0 0.0
    %506 = vmatprep.subr.mxu0 0.0
    %507 = vmatpush1.msra.mxu0 0.0
    %508 = vmatprep.subr.mxu0 0.0
    %509 = vmatpush1.msra.mxu0 0.0
    %510 = vmatprep.subr.mxu0 0.0
    %511 = vmatpush1.msra.mxu0 0.0
    %512 = vmatprep.subr.mxu0 0.0
    %513 = vmatpush1.msra.mxu0 0.0
    %514 = vmatprep.subr.mxu0 0.0
    %515 = vmatpush1.msra.mxu0 0.0
    %516 = vmatprep.subr.mxu0 0.0
    %517 = vmatpush1.msra.mxu0 0.0
    %518 = vmatprep.subr.mxu0 0.0
    %519 = vmatpush1.msra.mxu0 0.0
    %520 = vmatprep.subr.mxu0 0.0
    %521 = vmatpush1.msra.mxu0 0.0
    %522 = vmatprep.subr.mxu0 0.0
    %523 = vmatpush1.msra.mxu0 0.0
    %524 = vmatprep.subr.mxu0 0.0
    %525 = vmatpush1.msra.mxu0 0.0
    %526 = vmatprep.subr.mxu0 0.0
    %527 = vmatpush1.msra.mxu0 0.0
    %528 = vmatprep.subr.mxu0 0.0
    %529 = vmatpush1.msra.mxu0 0.0
    %530 = vmatprep.mubr.f32.mxu0 0.0
    %531 = vmatmul.mubr.f32.gmra.mrb[0].mxu0 %v457
    %v532 = vpop.f32.mrb[0].mxu0
    %v533 = vadd.f32 %v50, %v532
    %v534 = vpop.f32.mrb[0].mxu0
    %535 = vmatprep.mubr.f32.mxu0 0.0
    %536 = vmatmul.mubr.f32.gmra.mrb[0].mxu0 %v460
    %v537 = vpop.f32.mrb[0].mxu0
    %v538 = vadd.f32 %v51, %v537
    %v539 = vpop.f32.mrb[0].mxu0
    %540 = vdwg.mxu0
    %v541 = vxor.u32 %v533, 2147483648
    %v542 = vxor.u32 %v538, 2147483648
    %v543 = vmul.f32 %v541, 1.442695
    %v544 = vpow.pop %v543
    %v545 = vmul.f32 %v542, 1.442695
    %v546 = vpow.pop %v545
    %v547 = vadd.f32 %v544, 1.0
    %v548 = vadd.f32 %v546, 1.0
    %v549 = vrcp.pop %v547
    %v550 = vmul.f32 1.0, %v549
    %v551 = vrcp.pop %v548
    %v552 = vmul.f32 1.0, %v551
    %554 = vset.pattern.permute.xlu0 0
    %555 = vperm.xlu0 %554, %v550
    %v556 = vpop.permute.xlu0 %555
    %559 = vset.pattern.permute.xlu0 0
    %560 = vperm.xlu0 %559, %v552
    %v561 = vpop.permute.xlu0 %560
    %v563 = vmul.f32 %v373, %v556
    %v564 = vmul.f32 %v374, %v561
    %v565 = vadd.f32 %v563, %v95
    %v566 = vadd.f32 %v564, %v96
    %567 = vst [vmem:[#allocation2] sm:$0xff] %v565
    %568 = vst [vmem:[#allocation2 + $0x8] sm:$0xff] %v566
    %s569 = scalar_lea.vmem %s0, 32
    %v570 = vld [vmem:[%s569] sm:$0xff]
    %v571 = vld [vmem:[%s569 + $0x8] sm:$0xff]
    %v572 = vld [vmem:[%s569 + $0x10] sm:$0xff]
    %v573 = vld [vmem:[%s569 + $0x18] sm:$0xff]
    %578 = vrot.lane.b32.xlu0 %v570, 127
    %v579 = vpop.permute.xlu0 %578
    %580 = vrot.lane.b32.xlu0 %v571, 127
    %v581 = vpop.permute.xlu0 %580
    %582 = vrot.lane.b32.xlu0 %v572, 127
    %v583 = vpop.permute.xlu0 %582
    %584 = vrot.lane.b32.xlu0 %v573, 127
    %v585 = vpop.permute.xlu0 %584
    %v586 = vsel %vm68, %v579, %v581
    %v587 = vsel %vm68, %v583, %v585
    %590 = vrot.lane.b32.xlu0 %v570, 126
    %v591 = vpop.permute.xlu0 %590
    %592 = vrot.lane.b32.xlu0 %v571, 126
    %v593 = vpop.permute.xlu0 %592
    %594 = vrot.lane.b32.xlu0 %v572, 126
    %v595 = vpop.permute.xlu0 %594
    %596 = vrot.lane.b32.xlu0 %v573, 126
    %v597 = vpop.permute.xlu0 %596
    %v598 = vsel %vm81, %v591, %v593
    %v599 = vsel %vm81, %v595, %v597
    %602 = vrot.lane.b32.xlu0 %v570, 125
    %v603 = vpop.permute.xlu0 %602
    %604 = vrot.lane.b32.xlu0 %v571, 125
    %v605 = vpop.permute.xlu0 %604
    %606 = vrot.lane.b32.xlu0 %v572, 125
    %v607 = vpop.permute.xlu0 %606
    %608 = vrot.lane.b32.xlu0 %v573, 125
    %v609 = vpop.permute.xlu0 %608
    %v610 = vsel %vm94, %v603, %v605
    %v611 = vsel %vm94, %v607, %v609
    %614 = vrot.lane.b32.xlu0 %v570, 124
    %v615 = vpop.permute.xlu0 %614
    %616 = vrot.lane.b32.xlu0 %v571, 124
    %v617 = vpop.permute.xlu0 %616
    %618 = vrot.lane.b32.xlu0 %v572, 124
    %v619 = vpop.permute.xlu0 %618
    %620 = vrot.lane.b32.xlu0 %v573, 124
    %v621 = vpop.permute.xlu0 %620
    %v622 = vsel %vm107, %v615, %v617
    %v623 = vsel %vm107, %v619, %v621
    %626 = vrot.lane.b32.xlu0 %v570, 123
    %v627 = vpop.permute.xlu0 %626
    %628 = vrot.lane.b32.xlu0 %v571, 123
    %v629 = vpop.permute.xlu0 %628
    %630 = vrot.lane.b32.xlu0 %v572, 123
    %v631 = vpop.permute.xlu0 %630
    %632 = vrot.lane.b32.xlu0 %v573, 123
    %v633 = vpop.permute.xlu0 %632
    %v634 = vsel %vm120, %v627, %v629
    %v635 = vsel %vm120, %v631, %v633
    %638 = vrot.lane.b32.xlu0 %v570, 122
    %v639 = vpop.permute.xlu0 %638
    %640 = vrot.lane.b32.xlu0 %v571, 122
    %v641 = vpop.permute.xlu0 %640
    %642 = vrot.lane.b32.xlu0 %v572, 122
    %v643 = vpop.permute.xlu0 %642
    %644 = vrot.lane.b32.xlu0 %v573, 122
    %v645 = vpop.permute.xlu0 %644
    %v646 = vsel %vm133, %v639, %v641
    %v647 = vsel %vm133, %v643, %v645
    %650 = vmatprep.subr.mxu0 0.0
    %651 = vmatpush1.msra.mxu0 %v570
    %652 = vmatprep.subr.mxu0 0.0
    %653 = vmatpush1.msra.mxu0 %v572
    %654 = vmatprep.subr.mxu0 0.0
    %655 = vmatpush1.msra.mxu0 %v586
    %656 = vmatprep.subr.mxu0 0.0
    %657 = vmatpush1.msra.mxu0 %v587
    %658 = vmatprep.subr.mxu0 0.0
    %659 = vmatpush1.msra.mxu0 %v598
    %660 = vmatprep.subr.mxu0 0.0
    %661 = vmatpush1.msra.mxu0 %v599
    %662 = vmatprep.subr.mxu0 0.0
    %663 = vmatpush1.msra.mxu0 %v610
    %664 = vmatprep.subr.mxu0 0.0
    %665 = vmatpush1.msra.mxu0 %v611
    %666 = vmatprep.subr.mxu0 0.0
    %667 = vmatpush1.msra.mxu0 %v622
    %668 = vmatprep.subr.mxu0 0.0
    %669 = vmatpush1.msra.mxu0 %v623
    %670 = vmatprep.subr.mxu0 0.0
    %671 = vmatpush1.msra.mxu0 %v634
    %672 = vmatprep.subr.mxu0 0.0
    %673 = vmatpush1.msra.mxu0 %v635
    %674 = vmatprep.subr.mxu0 0.0
    %675 = vmatpush1.msra.mxu0 %v646
    %676 = vmatprep.subr.mxu0 0.0
    %677 = vmatpush1.msra.mxu0 %v647
    %678 = vmatprep.subr.mxu0 0.0
    %679 = vmatpush1.msra.mxu0 0.0
    %680 = vmatprep.subr.mxu0 0.0
    %681 = vmatpush1.msra.mxu0 0.0
    %682 = vmatprep.subr.mxu0 0.0
    %683 = vmatpush1.msra.mxu0 0.0
    %684 = vmatprep.subr.mxu0 0.0
    %685 = vmatpush1.msra.mxu0 0.0
    %686 = vmatprep.subr.mxu0 0.0
    %687 = vmatpush1.msra.mxu0 0.0
    %688 = vmatprep.subr.mxu0 0.0
    %689 = vmatpush1.msra.mxu0 0.0
    %690 = vmatprep.subr.mxu0 0.0
    %691 = vmatpush1.msra.mxu0 0.0
    %692 = vmatprep.subr.mxu0 0.0
    %693 = vmatpush1.msra.mxu0 0.0
    %694 = vmatprep.subr.mxu0 0.0
    %695 = vmatpush1.msra.mxu0 0.0
    %696 = vmatprep.subr.mxu0 0.0
    %697 = vmatpush1.msra.mxu0 0.0
    %698 = vmatprep.subr.mxu0 0.0
    %699 = vmatpush1.msra.mxu0 0.0
    %700 = vmatprep.subr.mxu0 0.0
    %701 = vmatpush1.msra.mxu0 0.0
    %702 = vmatprep.subr.mxu0 0.0
    %703 = vmatpush1.msra.mxu0 0.0
    %704 = vmatprep.subr.mxu0 0.0
    %705 = vmatpush1.msra.mxu0 0.0
    %706 = vmatprep.subr.mxu0 0.0
    %707 = vmatpush1.msra.mxu0 0.0
    %708 = vmatprep.subr.mxu0 0.0
    %709 = vmatpush1.msra.mxu0 0.0
    %710 = vmatprep.subr.mxu0 0.0
    %711 = vmatpush1.msra.mxu0 0.0
    %712 = vmatprep.subr.mxu0 0.0
    %713 = vmatpush1.msra.mxu0 0.0
    %714 = vmatprep.mubr.f32.mxu0 0.0
    %715 = vmatmul.mubr.f32.gmra.mrb[0].mxu0 %v140
    %v716 = vpop.f32.mrb[0].mxu0
    %v717 = vadd.f32 0.0, %v716
    %v718 = vpop.f32.mrb[0].mxu0
    %719 = vmatprep.mubr.f32.mxu0 0.0
    %720 = vmatmul.mubr.f32.gmra.mrb[0].mxu0 %v143
    %v721 = vpop.f32.mrb[0].mxu0
    %v722 = vadd.f32 0.0, %v721
    %v723 = vpop.f32.mrb[0].mxu0
    %724 = vdwg.mxu0
    %v725 = vmul.f32 %v717, %v223
    %v726 = vmul.f32 %v722, %v228
    %v727 = vadd.f32 %v725, %v235
    %v728 = vadd.f32 %v726, %v240
    %v729 = vmax.f32 %v727, 0.0
    %v730 = vmax.f32 %v728, 0.0
    %731 = vadd.xlane.f32.xlu0 %v729
    %v732 = vpop.xlane.xlu0 %731
    %733 = vadd.xlane.f32.xlu0 %v730
    %v734 = vpop.xlane.xlu0 %733
    %v735 = vmul.f32 %v732, %v250
    %v736 = vmul.f32 %v734, %v250
    %737 = vmatprep.subr.mxu0 0.0
    %738 = vmatpush1.msra.mxu0 %v735
    %739 = vmatprep.subr.mxu0 0.0
    %740 = vmatpush1.msra.mxu0 %v736
    %741 = vmatprep.subr.mxu0 0.0
    %742 = vmatpush1.msra.mxu0 0.0
    %743 = vmatprep.subr.mxu0 0.0
    %744 = vmatpush1.msra.mxu0 0.0
    %745 = vmatprep.subr.mxu0 0.0
    %746 = vmatpush1.msra.mxu0 0.0
    %747 = vmatprep.subr.mxu0 0.0
    %748 = vmatpush1.msra.mxu0 0.0
    %749 = vmatprep.subr.mxu0 0.0
    %750 = vmatpush1.msra.mxu0 0.0
    %751 = vmatprep.subr.mxu0 0.0
    %752 = vmatpush1.msra.mxu0 0.0
    %753 = vmatprep.subr.mxu0 0.0
    %754 = vmatpush1.msra.mxu0 0.0
    %755 = vmatprep.subr.mxu0 0.0
    %756 = vmatpush1.msra.mxu0 0.0
    %757 = vmatprep.subr.mxu0 0.0
    %758 = vmatpush1.msra.mxu0 0.0
    %759 = vmatprep.subr.mxu0 0.0
    %760 = vmatpush1.msra.mxu0 0.0
    %761 = vmatprep.subr.mxu0 0.0
    %762 = vmatpush1.msra.mxu0 0.0
    %763 = vmatprep.subr.mxu0 0.0
    %764 = vmatpush1.msra.mxu0 0.0
    %765 = vmatprep.subr.mxu0 0.0
    %766 = vmatpush1.msra.mxu0 0.0
    %767 = vmatprep.subr.mxu0 0.0
    %768 = vmatpush1.msra.mxu0 0.0
    %769 = vmatprep.subr.mxu0 0.0
    %770 = vmatpush1.msra.mxu0 0.0
    %771 = vmatprep.subr.mxu0 0.0
    %772 = vmatpush1.msra.mxu0 0.0
    %773 = vmatprep.subr.mxu0 0.0
    %774 = vmatpush1.msra.mxu0 0.0
    %775 = vmatprep.subr.mxu0 0.0
    %776 = vmatpush1.msra.mxu0 0.0
    %777 = vmatprep.subr.mxu0 0.0
    %778 = vmatpush1.msra.mxu0 0.0
    %779 = vmatprep.subr.mxu0 0.0
    %780 = vmatpush1.msra.mxu0 0.0
    %781 = vmatprep.subr.mxu0 0.0
    %782 = vmatpush1.msra.mxu0 0.0
    %783 = vmatprep.subr.mxu0 0.0
    %784 = vmatpush1.msra.mxu0 0.0
    %785 = vmatprep.subr.mxu0 0.0
    %786 = vmatpush1.msra.mxu0 0.0
    %787 = vmatprep.subr.mxu0 0.0
    %788 = vmatpush1.msra.mxu0 0.0
    %789 = vmatprep.subr.mxu0 0.0
    %790 = vmatpush1.msra.mxu0 0.0
    %791 = vmatprep.subr.mxu0 0.0
    %792 = vmatpush1.msra.mxu0 0.0
    %793 = vmatprep.subr.mxu0 0.0
    %794 = vmatpush1.msra.mxu0 0.0
    %795 = vmatprep.subr.mxu0 0.0
    %796 = vmatpush1.msra.mxu0 0.0
    %797 = vmatprep.subr.mxu0 0.0
    %798 = vmatpush1.msra.mxu0 0.0
    %799 = vmatprep.subr.mxu0 0.0
    %800 = vmatpush1.msra.mxu0 0.0
    %801 = vmatprep.mubr.f32.mxu0 0.0
    %802 = vmatmul.mubr.f32.gmra.mrb[0].mxu0 %v255
    %v803 = vpop.f32.mrb[0].mxu0
    %v804 = vadd.f32 %v44, %v803
    %v805 = vpop.f32.mrb[0].mxu0
    %806 = vmatprep.mubr.f32.mxu0 0.0
    %807 = vmatmul.mubr.f32.gmra.mrb[0].mxu0 %v258
    %v808 = vpop.f32.mrb[0].mxu0
    %v809 = vadd.f32 %v45, %v808
    %v810 = vpop.f32.mrb[0].mxu0
    %811 = vdwg.mxu0
    %v812 = vxor.u32 %v804, 2147483648
    %v813 = vxor.u32 %v809, 2147483648
    %v814 = vmul.f32 %v812, 1.442695
    %v815 = vpow.pop %v814
    %v816 = vmul.f32 %v813, 1.442695
    %v817 = vpow.pop %v816
    %v818 = vadd.f32 %v815, 1.0
    %v819 = vadd.f32 %v817, 1.0
    %v820 = vrcp.pop %v818
    %v821 = vmul.f32 1.0, %v820
    %v822 = vrcp.pop %v819
    %v823 = vmul.f32 1.0, %v822
    %825 = vset.pattern.permute.xlu0 0
    %826 = vperm.xlu0 %825, %v821
    %v827 = vpop.permute.xlu0 %826
    %830 = vset.pattern.permute.xlu0 0
    %831 = vperm.xlu0 %830, %v823
    %v832 = vpop.permute.xlu0 %831
    %v834 = vmul.f32 %v827, %v729
    %v835 = vmul.f32 %v832, %v730
    %v836 = vsub.f32 1.0, %v821
    %v837 = vsub.f32 1.0, %v823
    %839 = vset.pattern.permute.xlu0 0
    %840 = vperm.xlu0 %839, %v836
    %v841 = vpop.permute.xlu0 %840
    %844 = vset.pattern.permute.xlu0 0
    %845 = vperm.xlu0 %844, %v837
    %v846 = vpop.permute.xlu0 %845
    %v848 = vmul.f32 %v841, %v729
    %v849 = vmul.f32 %v846, %v730
    %v850 = vadd.f32 %v834, %v848
    %v851 = vadd.f32 %v835, %v849
    %852 = vadd.xlane.f32.xlu0 %v850
    %v853 = vpop.xlane.xlu0 %852
    %854 = vadd.xlane.f32.xlu0 %v851
    %v855 = vpop.xlane.xlu0 %854
    %v856 = vmul.f32 %v853, %v250
    %v857 = vmul.f32 %v855, %v250
    %858 = vmatprep.subr.mxu0 0.0
    %859 = vmatpush1.msra.mxu0 %v856
    %860 = vmatprep.subr.mxu0 0.0
    %861 = vmatpush1.msra.mxu0 %v857
    %862 = vmatprep.subr.mxu0 0.0
    %863 = vmatpush1.msra.mxu0 0.0
    %864 = vmatprep.subr.mxu0 0.0
    %865 = vmatpush1.msra.mxu0 0.0
    %866 = vmatprep.subr.mxu0 0.0
    %867 = vmatpush1.msra.mxu0 0.0
    %868 = vmatprep.subr.mxu0 0.0
    %869 = vmatpush1.msra.mxu0 0.0
    %870 = vmatprep.subr.mxu0 0.0
    %871 = vmatpush1.msra.mxu0 0.0
    %872 = vmatprep.subr.mxu0 0.0
    %873 = vmatpush1.msra.mxu0 0.0
    %874 = vmatprep.subr.mxu0 0.0
    %875 = vmatpush1.msra.mxu0 0.0
    %876 = vmatprep.subr.mxu0 0.0
    %877 = vmatpush1.msra.mxu0 0.0
    %878 = vmatprep.subr.mxu0 0.0
    %879 = vmatpush1.msra.mxu0 0.0
    %880 = vmatprep.subr.mxu0 0.0
    %881 = vmatpush1.msra.mxu0 0.0
    %882 = vmatprep.subr.mxu0 0.0
    %883 = vmatpush1.msra.mxu0 0.0
    %884 = vmatprep.subr.mxu0 0.0
    %885 = vmatpush1.msra.mxu0 0.0
    %886 = vmatprep.subr.mxu0 0.0
    %887 = vmatpush1.msra.mxu0 0.0
    %888 = vmatprep.subr.mxu0 0.0
    %889 = vmatpush1.msra.mxu0 0.0
    %890 = vmatprep.subr.mxu0 0.0
    %891 = vmatpush1.msra.mxu0 0.0
    %892 = vmatprep.subr.mxu0 0.0
    %893 = vmatpush1.msra.mxu0 0.0
    %894 = vmatprep.subr.mxu0 0.0
    %895 = vmatpush1.msra.mxu0 0.0
    %896 = vmatprep.subr.mxu0 0.0
    %897 = vmatpush1.msra.mxu0 0.0
    %898 = vmatprep.subr.mxu0 0.0
    %899 = vmatpush1.msra.mxu0 0.0
    %900 = vmatprep.subr.mxu0 0.0
    %901 = vmatpush1.msra.mxu0 0.0
    %902 = vmatprep.subr.mxu0 0.0
    %903 = vmatpush1.msra.mxu0 0.0
    %904 = vmatprep.subr.mxu0 0.0
    %905 = vmatpush1.msra.mxu0 0.0
    %906 = vmatprep.subr.mxu0 0.0
    %907 = vmatpush1.msra.mxu0 0.0
    %908 = vmatprep.subr.mxu0 0.0
    %909 = vmatpush1.msra.mxu0 0.0
    %910 = vmatprep.subr.mxu0 0.0
    %911 = vmatpush1.msra.mxu0 0.0
    %912 = vmatprep.subr.mxu0 0.0
    %913 = vmatpush1.msra.mxu0 0.0
    %914 = vmatprep.subr.mxu0 0.0
    %915 = vmatpush1.msra.mxu0 0.0
    %916 = vmatprep.subr.mxu0 0.0
    %917 = vmatpush1.msra.mxu0 0.0
    %918 = vmatprep.subr.mxu0 0.0
    %919 = vmatpush1.msra.mxu0 0.0
    %920 = vmatprep.subr.mxu0 0.0
    %921 = vmatpush1.msra.mxu0 0.0
    %922 = vmatprep.mubr.f32.mxu0 0.0
    %923 = vmatmul.mubr.f32.gmra.mrb[0].mxu0 %v382
    %v924 = vpop.f32.mrb[0].mxu0
    %v925 = vadd.f32 %v47, %v924
    %v926 = vpop.f32.mrb[0].mxu0
    %927 = vdwg.mxu0
    %v928 = vmax.f32 %v925, 0.0
    %v930 = vsel %vm462, %v928, 0
    %932 = vmatprep.subr.mxu0 0.0
    %933 = vmatpush1.msra.mxu0 %v930
    %934 = vmatprep.subr.mxu0 0.0
    %935 = vmatpush1.msra.mxu0 0.0
    %936 = vmatprep.subr.mxu0 0.0
    %937 = vmatpush1.msra.mxu0 0.0
    %938 = vmatprep.subr.mxu0 0.0
    %939 = vmatpush1.msra.mxu0 0.0
    %940 = vmatprep.subr.mxu0 0.0
    %941 = vmatpush1.msra.mxu0 0.0
    %942 = vmatprep.subr.mxu0 0.0
    %943 = vmatpush1.msra.mxu0 0.0
    %944 = vmatprep.subr.mxu0 0.0
    %945 = vmatpush1.msra.mxu0 0.0
    %946 = vmatprep.subr.mxu0 0.0
    %947 = vmatpush1.msra.mxu0 0.0
    %948 = vmatprep.subr.mxu0 0.0
    %949 = vmatpush1.msra.mxu0 0.0
    %950 = vmatprep.subr.mxu0 0.0
    %951 = vmatpush1.msra.mxu0 0.0
    %952 = vmatprep.subr.mxu0 0.0
    %953 = vmatpush1.msra.mxu0 0.0
    %954 = vmatprep.subr.mxu0 0.0
    %955 = vmatpush1.msra.mxu0 0.0
    %956 = vmatprep.subr.mxu0 0.0
    %957 = vmatpush1.msra.mxu0 0.0
    %958 = vmatprep.subr.mxu0 0.0
    %959 = vmatpush1.msra.mxu0 0.0
    %960 = vmatprep.subr.mxu0 0.0
    %961 = vmatpush1.msra.mxu0 0.0
    %962 = vmatprep.subr.mxu0 0.0
    %963 = vmatpush1.msra.mxu0 0.0
    %964 = vmatprep.subr.mxu0 0.0
    %965 = vmatpush1.msra.mxu0 0.0
    %966 = vmatprep.subr.mxu0 0.0
    %967 = vmatpush1.msra.mxu0 0.0
    %968 = vmatprep.subr.mxu0 0.0
    %969 = vmatpush1.msra.mxu0 0.0
    %970 = vmatprep.subr.mxu0 0.0
    %971 = vmatpush1.msra.mxu0 0.0
    %972 = vmatprep.subr.mxu0 0.0
    %973 = vmatpush1.msra.mxu0 0.0
    %974 = vmatprep.subr.mxu0 0.0
    %975 = vmatpush1.msra.mxu0 0.0
    %976 = vmatprep.subr.mxu0 0.0
    %977 = vmatpush1.msra.mxu0 0.0
    %978 = vmatprep.subr.mxu0 0.0
    %979 = vmatpush1.msra.mxu0 0.0
    %980 = vmatprep.subr.mxu0 0.0
    %981 = vmatpush1.msra.mxu0 0.0
    %982 = vmatprep.subr.mxu0 0.0
    %983 = vmatpush1.msra.mxu0 0.0
    %984 = vmatprep.subr.mxu0 0.0
    %985 = vmatpush1.msra.mxu0 0.0
    %986 = vmatprep.subr.mxu0 0.0
    %987 = vmatpush1.msra.mxu0 0.0
    %988 = vmatprep.subr.mxu0 0.0
    %989 = vmatpush1.msra.mxu0 0.0
    %990 = vmatprep.subr.mxu0 0.0
    %991 = vmatpush1.msra.mxu0 0.0
    %992 = vmatprep.subr.mxu0 0.0
    %993 = vmatpush1.msra.mxu0 0.0
    %994 = vmatprep.subr.mxu0 0.0
    %995 = vmatpush1.msra.mxu0 0.0
    %996 = vmatprep.mubr.f32.mxu0 0.0
    %997 = vmatmul.mubr.f32.gmra.mrb[0].mxu0 %v457
    %v998 = vpop.f32.mrb[0].mxu0
    %v999 = vadd.f32 %v50, %v998
    %v1000 = vpop.f32.mrb[0].mxu0
    %1001 = vmatprep.mubr.f32.mxu0 0.0
    %1002 = vmatmul.mubr.f32.gmra.mrb[0].mxu0 %v460
    %v1003 = vpop.f32.mrb[0].mxu0
    %v1004 = vadd.f32 %v51, %v1003
    %v1005 = vpop.f32.mrb[0].mxu0
    %1006 = vdwg.mxu0
    %v1007 = vxor.u32 %v999, 2147483648
    %v1008 = vxor.u32 %v1004, 2147483648
    %v1009 = vmul.f32 %v1007, 1.442695
    %v1010 = vpow.pop %v1009
    %v1011 = vmul.f32 %v1008, 1.442695
    %v1012 = vpow.pop %v1011
    %v1013 = vadd.f32 %v1010, 1.0
    %v1014 = vadd.f32 %v1012, 1.0
    %v1015 = vrcp.pop %v1013
    %v1016 = vmul.f32 1.0, %v1015
    %v1017 = vrcp.pop %v1014
    %v1018 = vmul.f32 1.0, %v1017
    %1020 = vset.pattern.permute.xlu0 0
    %1021 = vperm.xlu0 %1020, %v1016
    %v1022 = vpop.permute.xlu0 %1021
    %1025 = vset.pattern.permute.xlu0 0
    %1026 = vperm.xlu0 %1025, %v1018
    %v1027 = vpop.permute.xlu0 %1026
    %v1029 = vmul.f32 %v850, %v1022
    %v1030 = vmul.f32 %v851, %v1027
    %v1031 = vadd.f32 %v1029, %v610
    %v1032 = vadd.f32 %v1030, %v611
    %s1033 = scalar_lea.vmem [#allocation2], 16
    %1034 = vst [vmem:[%s1033] sm:$0xff] %v1031
    %1035 = vst [vmem:[%s1033 + $0x8] sm:$0xff] %v1032
    // Predicated region
    $region42: #{tpu_custom_call.1} parent=1 // pred_check
      _
    $region43: #{tpu_custom_call.1} parent=1 // pred_check_branch
      %1037 = sbr.rel (0) target = $region45
    $region44: #{tpu_custom_call.1} parent=1 // pred_region
      %s1039 = ssub.s32 512, 512
      %1040 = vsyncadd [#allocation3], %s1039
      %s1041 = sshll.u32 [#allocation2], 4
      %s1042 = int_to_ptr.vmem [resolvable:$true] %s1041
      %1047 = dma.vmem_to_hbm [thread:$0]  %s1042, 512, %s10, [#allocation3], 128, 128, 8
    $region45: #{tpu_custom_call.1} parent=1 // pred_fallthru
      _
    // Predicated region
    $region46: #{tpu_custom_call.1} parent=1 // pred_check
      _
    $region47: #{tpu_custom_call.1} parent=1 // pred_check_branch
      %1049 = sbr.rel (0) target = $region49
    $region48: #{tpu_custom_call.1} parent=1 // pred_region
      %1050 = dma.done [#allocation3], 512
    $region49: #{tpu_custom_call.1} parent=1 // pred_fallthru
      _
    %1051 = vsyncpa [#allocation3], 1

</llo_original>
